<compile_context>
chip_gen: v5e
topology: v5e:2x2
jax: 0.10.0
libtpu: 0.0.40
codegen_flags: <defaults>
</compile_context>

<pallas_src>
import functools

import jax
import jax.numpy as jnp
from jax import lax
from jax.experimental import pallas as pl
from jax.experimental.pallas import tpu as pltpu

P_DROP = 0.2
INV_SCALE_FACTOR = 0.3  # scores are divided by this (folded into q as a mul)


def _round_up(x, m):
    return (x + m - 1) // m * m


def _mix32(x):
    """murmur3-style 32-bit finalizer on uint32 (plain VPU integer ops)."""
    x = x ^ (x >> jnp.uint32(16))
    x = x * jnp.uint32(0x7FEB352D)
    x = x ^ (x >> jnp.uint32(15))
    x = x * jnp.uint32(0x846CA68B)
    x = x ^ (x >> jnp.uint32(16))
    return x


def _flash_attn_dropout_kernel(
    q_ref, k_ref, v_ref, o_ref, m_sc, l_sc, acc_sc,
    *, sk_actual, sq_pad, sk_pad, seed, p_drop,
):
    ki = pl.program_id(2)

    @pl.when(ki == 0)
    def _init():
        m_sc[...] = jnp.full(m_sc.shape, -jnp.inf, dtype=jnp.float32)
        l_sc[...] = jnp.zeros(l_sc.shape, dtype=jnp.float32)
        acc_sc[...] = jnp.zeros(acc_sc.shape, dtype=jnp.float32)

    q = q_ref[...]          # (q_tile, d_pad)  bf16, already scaled by 1/0.3
    k = k_ref[...]          # (kv_tile, d_pad) bf16

    # scores: contract last dims of both operands directly (no k.T copy)
    s = lax.dot_general(q, k, (((1,), (1,)), ((), ())),
                        preferred_element_type=jnp.float32)

    q_tile, kv_tile = s.shape
    col = ki * kv_tile + lax.broadcasted_iota(jnp.int32, s.shape, 1)

    # mask out padded KV columns
    s = jnp.where(col < sk_actual, s, -1e30)

    m_prev = m_sc[...]
    m_new = jnp.maximum(m_prev, jnp.max(s, axis=-1, keepdims=True))
    alpha = jnp.exp(m_prev - m_new)
    e = jnp.exp(s - m_new)                       # unnormalized probs in (0, 1]

    l_sc[...] = alpha * l_sc[...] + jnp.sum(e, axis=-1, keepdims=True)

    if p_drop > 0.0:
        # deterministic, tiling-invariant counter-hash dropout mask
        bh = pl.program_id(0)
        row = pl.program_id(1) * q_tile + lax.broadcasted_iota(
            jnp.int32, s.shape, 0)
        ctr = (bh * sq_pad + row) * sk_pad + col
        seed_u = jnp.uint32((seed * 2654435761 + 0x9E3779B9) & 0xFFFFFFFF)
        bits = _mix32(ctr.astype(jnp.uint32) ^ seed_u)
        threshold = jnp.uint32(int(p_drop * 4294967296.0))
        e = jnp.where(bits >= threshold, e, 0.0)   # drop if bits < threshold

    acc_sc[...] = alpha * acc_sc[...] + jnp.dot(
        e.astype(v_ref.dtype), v_ref[...], preferred_element_type=jnp.float32)
    m_sc[...] = m_new

    @pl.when(ki == pl.num_programs(2) - 1)
    def _finalize():
        # deferred softmax normalization + dropout 1/(1-p) rescale, applied
        # once on the small (q_tile, dv_pad) accumulator instead of per score.
        scale = (1.0 / (1.0 - p_drop)) / l_sc[...]
        o_ref[...] = (acc_sc[...] * scale).astype(o_ref.dtype)


@functools.partial(jax.jit, static_argnames=("seed", "p_drop"))
def attention_dropout(query, key, value, seed=0, p_drop=P_DROP):
    B, H, Sq, D = query.shape
    _, _, Sk, Dk = key.shape
    _, _, Sv, Dv = value.shape
    assert Dk == D and Sv == Sk

    BH = B * H

    # tile sizes: q rows multiple of 8 (sublane), kv / head dims lane-dense
    q_tile = min(256, _round_up(Sq, 8))
    kv_tile = min(512, _round_up(Sk, 128))
    d_pad = _round_up(D, 128)
    dv_pad = _round_up(Dv, 128)
    sq_pad = _round_up(Sq, q_tile)
    sk_pad = _round_up(Sk, kv_tile)

    # fold 1/0.3 into q once; bf16 operands for the MXU (2x f32 throughput)
    qs = (query.reshape(BH, Sq, D).astype(jnp.float32)
          * (1.0 / INV_SCALE_FACTOR)).astype(jnp.bfloat16)
    ks = key.reshape(BH, Sk, D).astype(jnp.bfloat16)
    vs = value.reshape(BH, Sk, Dv).astype(jnp.bfloat16)

    qs = jnp.pad(qs, ((0, 0), (0, sq_pad - Sq), (0, d_pad - D)))
    ks = jnp.pad(ks, ((0, 0), (0, sk_pad - Sk), (0, d_pad - D)))
    vs = jnp.pad(vs, ((0, 0), (0, sk_pad - Sk), (0, dv_pad - Dv)))

    grid = (BH, sq_pad // q_tile, sk_pad // kv_tile)

    kernel = functools.partial(
        _flash_attn_dropout_kernel,
        sk_actual=Sk, sq_pad=sq_pad, sk_pad=sk_pad,
        seed=int(seed), p_drop=float(p_drop))

    flops = 2 * BH * sq_pad * sk_pad * (d_pad + dv_pad)
    bytes_accessed = 2 * (qs.size + ks.size + vs.size) + 4 * BH * sq_pad * dv_pad

    out = pl.pallas_call(
        kernel,
        out_shape=jax.ShapeDtypeStruct((BH, sq_pad, dv_pad), jnp.float32),
        grid=grid,
        in_specs=[
            pl.BlockSpec((None, q_tile, d_pad), lambda bh, qi, ki: (bh, qi, 0)),
            pl.BlockSpec((None, kv_tile, d_pad), lambda bh, qi, ki: (bh, ki, 0)),
            pl.BlockSpec((None, kv_tile, dv_pad), lambda bh, qi, ki: (bh, ki, 0)),
        ],
        out_specs=pl.BlockSpec((None, q_tile, dv_pad),
                               lambda bh, qi, ki: (bh, qi, 0)),
        scratch_shapes=[
            pltpu.VMEM((q_tile, 1), jnp.float32),        # running max m
            pltpu.VMEM((q_tile, 1), jnp.float32),        # running denom l
            pltpu.VMEM((q_tile, dv_pad), jnp.float32),   # output accumulator
        ],
        compiler_params=pltpu.CompilerParams(
            dimension_semantics=("parallel", "parallel", "arbitrary")),
        cost_estimate=pl.CostEstimate(
            flops=flops,
            transcendentals=BH * sq_pad * sk_pad,
            bytes_accessed=bytes_accessed),
    )(qs, ks, vs)

    return out[:, :Sq, :Dv].reshape(B, H, Sq, Dv)


def _reference_no_dropout(query, key, value):
    # pure-JAX reference (dropout disabled), using the same bf16 input rounding
    qs = (query * (1.0 / INV_SCALE_FACTOR)).astype(jnp.bfloat16).astype(jnp.float32)
    ks = key.astype(jnp.bfloat16).astype(jnp.float32)
    vs = value.astype(jnp.bfloat16).astype(jnp.float32)
    s = jnp.einsum("bhqd,bhkd->bhqk", qs, ks)
    p = jax.nn.softmax(s, axis=-1)
    return jnp.einsum("bhqk,bhkd->bhqd", p, vs)


if __name__ == "__main__":
    # small shapes consistent with the module (value seq-len made equal to key's)
    B, H, Sq, Sk, D = 1, 2, 6, 5, 4

    root = jax.random.PRNGKey(0)
    kq, kk, kv = jax.random.split(root, 3)
    query = jax.random.normal(kq, (B, H, Sq, D), dtype=jnp.float32)
    key = jax.random.normal(kk, (B, H, Sk, D), dtype=jnp.float32)
    value = jax.random.normal(kv, (B, H, Sk, D), dtype=jnp.float32)

    # correctness check with dropout disabled (deterministic path)
    out_nodrop = attention_dropout(query, key, value, seed=0, p_drop=0.0)
    jax.block_until_ready(out_nodrop)
    ref = _reference_no_dropout(query, key, value)
    assert out_nodrop.shape == (B, H, Sq, D)
    assert jnp.allclose(out_nodrop, ref, rtol=5e-2, atol=5e-2), float(
        jnp.max(jnp.abs(out_nodrop - ref)))

    # full forward pass matching the PyTorch module (dropout p = 0.2)
    out = attention_dropout(query, key, value, seed=0)
    jax.block_until_ready(out)
    assert out.shape == (B, H, Sq, D)
    assert jnp.isfinite(out).all()
    print("KERNEL_OK")
</pallas_src>

<mosaic_0001>
module attributes {stable_mosaic.version = 11 : i64} {
  func.func @_flash_attn_dropout_kernel(%arg0: i32, %arg1: i32, %arg2: i32, %arg3: memref<1x8x128xbf16, #tpu.memory_space<vmem>>, %arg4: memref<1x128x128xbf16, #tpu.memory_space<vmem>>, %arg5: memref<1x128x128xbf16, #tpu.memory_space<vmem>>, %arg6: memref<1x8x128xf32, #tpu.memory_space<vmem>>, %arg7: memref<8x1xf32, #tpu.memory_space<vmem>>, %arg8: memref<8x1xf32, #tpu.memory_space<vmem>>, %arg9: memref<8x128xf32, #tpu.memory_space<vmem>>) attributes {dimension_semantics = [#tpu.dimension_semantics<parallel>, #tpu.dimension_semantics<parallel>, #tpu.dimension_semantics<arbitrary>], iteration_bounds = array<i64: 2, 1, 1>, scalar_prefetch = 0 : i64, scratch_operands = 3 : i64, tpu.core_type = #tpu.core_type<tc>, window_params = [{transform_indices = @transform_0, window_bounds = array<i64: 1, 8, 128>}, {transform_indices = @transform_1, window_bounds = array<i64: 1, 128, 128>}, {transform_indices = @transform_2, window_bounds = array<i64: 1, 128, 128>}, {transform_indices = @transform_3, window_bounds = array<i64: 1, 8, 128>}]} {
    %c0_i32 = arith.constant 0 : i32
    %0 = arith.cmpi eq, %arg2, %c0_i32 : i32
    %1 = arith.extui %0 : i1 to i32
    %c0_i32_0 = arith.constant 0 : i32
    %2 = arith.cmpi ne, %1, %c0_i32_0 : i32
    scf.if %2 {
      %cst_27 = arith.constant 0xFF800000 : f32
      %44 = vector.broadcast %cst_27 : f32 to vector<8x1xf32>
      %c0_28 = arith.constant 0 : index
      %c0_29 = arith.constant 0 : index
      %45 = vector.load %arg7[%c0_28, %c0_29] : memref<8x1xf32, #tpu.memory_space<vmem>>, vector<8x1xf32>
      tpu.vector_store %arg7[%c0_28, %c0_29], %44 {strides = array<i32>} : memref<8x1xf32, #tpu.memory_space<vmem>>, vector<8x1xf32>,
      %cst_30 = arith.constant 0.000000e+00 : f32
      %46 = vector.broadcast %cst_30 : f32 to vector<8x1xf32>
      %c0_31 = arith.constant 0 : index
      %c0_32 = arith.constant 0 : index
      %47 = vector.load %arg8[%c0_31, %c0_32] : memref<8x1xf32, #tpu.memory_space<vmem>>, vector<8x1xf32>
      tpu.vector_store %arg8[%c0_31, %c0_32], %46 {strides = array<i32>} : memref<8x1xf32, #tpu.memory_space<vmem>>, vector<8x1xf32>,
      %cst_33 = arith.constant 0.000000e+00 : f32
      %48 = vector.broadcast %cst_33 : f32 to vector<8x128xf32>
      %c0_34 = arith.constant 0 : index
      %c0_35 = arith.constant 0 : index
      %49 = vector.load %arg9[%c0_34, %c0_35] : memref<8x128xf32, #tpu.memory_space<vmem>>, vector<8x128xf32>
      tpu.vector_store %arg9[%c0_34, %c0_35], %48 {strides = array<i32>} : memref<8x128xf32, #tpu.memory_space<vmem>>, vector<8x128xf32>,
    } else {
    }
    %c0 = arith.constant 0 : index
    %c0_1 = arith.constant 0 : index
    %c0_2 = arith.constant 0 : index
    %3 = vector.load %arg3[%c0, %c0_1, %c0_2] : memref<1x8x128xbf16, #tpu.memory_space<vmem>>, vector<1x8x128xbf16>
    %4 = vector.shape_cast %3 : vector<1x8x128xbf16> to vector<8x128xbf16>
    %c0_3 = arith.constant 0 : index
    %c0_4 = arith.constant 0 : index
    %c0_5 = arith.constant 0 : index
    %5 = vector.load %arg4[%c0_3, %c0_4, %c0_5] : memref<1x128x128xbf16, #tpu.memory_space<vmem>>, vector<1x128x128xbf16>
    %6 = vector.shape_cast %5 : vector<1x128x128xbf16> to vector<128x128xbf16>
    %cst = arith.constant dense<0.000000e+00> : vector<8x128xf32>
    %7 = tpu.matmul %4, %6, %cst {dimension_numbers = #tpu.dot_dimension_numbers<[1], [1], [0], [0], [0, 0, 1, 0], [], []>} : vector<8x128xbf16>, vector<128x128xbf16>, vector<8x128xf32> -> vector<8x128xf32>
    %c128_i32 = arith.constant 128 : i32
    %8 = arith.muli %arg2, %c128_i32 : i32
    %9 = tpu.iota {dimensions = array<i32: 1>} : vector<8x128xi32>
    %10 = vector.broadcast %8 : i32 to vector<8x128xi32>
    %11 = arith.addi %10, %9 : vector<8x128xi32>
    %c5_i32 = arith.constant 5 : i32
    %12 = vector.broadcast %c5_i32 : i32 to vector<8x128xi32>
    %13 = arith.cmpi slt, %11, %12 : vector<8x128xi32>
    %cst_6 = arith.constant -1.000000e+30 : f32
    %14 = vector.broadcast %cst_6 : f32 to vector<8x128xf32>
    %15 = arith.select %13, %7, %14 : vector<8x128xi1>, vector<8x128xf32>
    %c0_7 = arith.constant 0 : index
    %c0_8 = arith.constant 0 : index
    %16 = vector.load %arg7[%c0_7, %c0_8] : memref<8x1xf32, #tpu.memory_space<vmem>>, vector<8x1xf32>
    %cst_9 = arith.constant dense<0xFF800000> : vector<8xf32>
    %17 = vector.multi_reduction <maximumf>, %15, %cst_9 [1] : vector<8x128xf32> to vector<8xf32>
    %18 = vector.shape_cast %17 : vector<8xf32> to vector<8x1xf32>
    %19 = arith.maximumf %16, %18 : vector<8x1xf32>
    %20 = arith.subf %16, %19 : vector<8x1xf32>
    %21 = math.exp %20 : vector<8x1xf32>
    %22 = vector.broadcast %19 : vector<8x1xf32> to vector<8x128xf32>
    %23 = arith.subf %15, %22 : vector<8x128xf32>
    %24 = math.exp %23 : vector<8x128xf32>
    %c0_10 = arith.constant 0 : index
    %c0_11 = arith.constant 0 : index
    %25 = vector.load %arg8[%c0_10, %c0_11] : memref<8x1xf32, #tpu.memory_space<vmem>>, vector<8x1xf32>
    %26 = arith.mulf %21, %25 : vector<8x1xf32>
    %cst_12 = arith.constant dense<0.000000e+00> : vector<8xf32>
    %27 = vector.multi_reduction <add>, %24, %cst_12 [1] : vector<8x128xf32> to vector<8xf32>
    %28 = vector.shape_cast %27 : vector<8xf32> to vector<8x1xf32>
    %29 = arith.addf %26, %28 : vector<8x1xf32>
    %c0_13 = arith.constant 0 : index
    %c0_14 = arith.constant 0 : index
    %30 = vector.load %arg8[%c0_13, %c0_14] : memref<8x1xf32, #tpu.memory_space<vmem>>, vector<8x1xf32>
    tpu.vector_store %arg8[%c0_13, %c0_14], %29 {strides = array<i32>} : memref<8x1xf32, #tpu.memory_space<vmem>>, vector<8x1xf32>,
    %c0_15 = arith.constant 0 : index
    %c0_16 = arith.constant 0 : index
    %31 = vector.load %arg9[%c0_15, %c0_16] : memref<8x128xf32, #tpu.memory_space<vmem>>, vector<8x128xf32>
    %32 = vector.broadcast %21 : vector<8x1xf32> to vector<8x128xf32>
    %33 = arith.mulf %32, %31 : vector<8x128xf32>
    %34 = arith.truncf %24 : vector<8x128xf32> to vector<8x128xbf16>
    %c0_17 = arith.constant 0 : index
    %c0_18 = arith.constant 0 : index
    %c0_19 = arith.constant 0 : index
    %35 = vector.load %arg5[%c0_17, %c0_18, %c0_19] : memref<1x128x128xbf16, #tpu.memory_space<vmem>>, vector<1x128x128xbf16>
    %36 = vector.shape_cast %35 : vector<1x128x128xbf16> to vector<128x128xbf16>
    %cst_20 = arith.constant dense<0.000000e+00> : vector<8x128xf32>
    %37 = tpu.matmul %34, %36, %cst_20 {dimension_numbers = #tpu.dot_dimension_numbers<[1], [0], [0], [1], [0, 0, 1, 1], [], []>} : vector<8x128xbf16>, vector<128x128xbf16>, vector<8x128xf32> -> vector<8x128xf32>
    %38 = arith.addf %33, %37 : vector<8x128xf32>
    %c0_21 = arith.constant 0 : index
    %c0_22 = arith.constant 0 : index
    %39 = vector.load %arg9[%c0_21, %c0_22] : memref<8x128xf32, #tpu.memory_space<vmem>>, vector<8x128xf32>
    tpu.vector_store %arg9[%c0_21, %c0_22], %38 {strides = array<i32>} : memref<8x128xf32, #tpu.memory_space<vmem>>, vector<8x128xf32>,
    %c0_23 = arith.constant 0 : index
    %c0_24 = arith.constant 0 : index
    %40 = vector.load %arg7[%c0_23, %c0_24] : memref<8x1xf32, #tpu.memory_space<vmem>>, vector<8x1xf32>
    tpu.vector_store %arg7[%c0_23, %c0_24], %19 {strides = array<i32>} : memref<8x1xf32, #tpu.memory_space<vmem>>, vector<8x1xf32>,
    %c0_i32_25 = arith.constant 0 : i32
    %41 = arith.cmpi eq, %arg2, %c0_i32_25 : i32
    %42 = arith.extui %41 : i1 to i32
    %c0_i32_26 = arith.constant 0 : i32
    %43 = arith.cmpi ne, %42, %c0_i32_26 : i32
    scf.if %43 {
      %c0_27 = arith.constant 0 : index
      %c0_28 = arith.constant 0 : index
      %44 = vector.load %arg8[%c0_27, %c0_28] : memref<8x1xf32, #tpu.memory_space<vmem>>, vector<8x1xf32>
      %cst_29 = arith.constant 1.000000e+00 : f32
      %45 = vector.broadcast %cst_29 : f32 to vector<8x1xf32>
      %46 = arith.divf %45, %44 : vector<8x1xf32>
      %c0_30 = arith.constant 0 : index
      %c0_31 = arith.constant 0 : index
      %47 = vector.load %arg9[%c0_30, %c0_31] : memref<8x128xf32, #tpu.memory_space<vmem>>, vector<8x128xf32>
      %48 = vector.broadcast %46 : vector<8x1xf32> to vector<8x128xf32>
      %49 = arith.mulf %47, %48 : vector<8x128xf32>
      %c0_32 = arith.constant 0 : index
      %c0_33 = arith.constant 0 : index
      %c0_34 = arith.constant 0 : index
      %50 = vector.load %arg6[%c0_32, %c0_33, %c0_34] : memref<1x8x128xf32, #tpu.memory_space<vmem>>, vector<1x8x128xf32>
      %51 = vector.shape_cast %50 : vector<1x8x128xf32> to vector<8x128xf32>
      %52 = vector.shape_cast %49 : vector<8x128xf32> to vector<1x8x128xf32>
      tpu.vector_store %arg6[%c0_32, %c0_33, %c0_34], %52 {strides = array<i32>} : memref<1x8x128xf32, #tpu.memory_space<vmem>>, vector<1x8x128xf32>,
    } else {
    }
    return
  }
  func.func @transform_0(%arg0: i32, %arg1: i32, %arg2: i32) -> (i32, i32, i32) {
    %c0_i32 = arith.constant 0 : i32
    %c0_i32_0 = arith.constant 0 : i32
    return %arg0, %arg1, %c0_i32 : i32, i32, i32
  }
  func.func @transform_1(%arg0: i32, %arg1: i32, %arg2: i32) -> (i32, i32, i32) {
    %c0_i32 = arith.constant 0 : i32
    %c0_i32_0 = arith.constant 0 : i32
    return %arg0, %arg2, %c0_i32 : i32, i32, i32
  }
  func.func @transform_2(%arg0: i32, %arg1: i32, %arg2: i32) -> (i32, i32, i32) {
    %c0_i32 = arith.constant 0 : i32
    %c0_i32_0 = arith.constant 0 : i32
    return %arg0, %arg2, %c0_i32 : i32, i32, i32
  }
  func.func @transform_3(%arg0: i32, %arg1: i32, %arg2: i32) -> (i32, i32, i32) {
    %c0_i32 = arith.constant 0 : i32
    %c0_i32_0 = arith.constant 0 : i32
    return %arg0, %arg1, %c0_i32 : i32, i32, i32
  }
}

</mosaic_0001>

<llo_original>
// kernel: attention_dropout.1
$region0: #{attention_dropout.1}
  #allocation0 [shape = 'u32[]', space=smem, size = 0x4, offset = 0x4, fixed_abs, tag = 'smem constant byte address 0x4 - core index']
  #allocation1 [shape = 'u32[72,128]{1,0:T(1,128)}', space=vmem, size = 0x9000, scoped, tag = 'internal scratch']
  #allocation2 [shape = 'f32[8,1]{1,0:T(8,128)}', space=vmem, size = 0x1000, scoped, tag = 'scratch operand']
  #allocation3 [shape = 'f32[8,1]{1,0:T(8,128)}', space=vmem, size = 0x1000, scoped, tag = 'scratch operand']
  #allocation4 [shape = 'f32[8,128]{1,0:T(8,128)}', space=vmem, size = 0x1000, scoped, tag = 'scratch operand']
  %s0 = inlined_call_operand.vmem [shape: bf16[2,8,128], index: 0, kind: input, shape index: {}]
  %s1 = inlined_call_operand.vmem [shape: bf16[2,128,128], index: 1, kind: input, shape index: {}]
  %s2 = inlined_call_operand.vmem [shape: bf16[2,128,128], index: 2, kind: input, shape index: {}]
  %s3 = inlined_call_operand.vmem [shape: f32[2,8,128], index: 3, kind: output, shape index: {}]
  %s4 = sld [smem:[#allocation0]]
  $region53: #{attention_dropout.1} parent=0
    _
  %s6 = ssub.s32 1, %s4
  %s7 = scalar_select 0, %s6, %s4
  loop: start=0, step=1, limit=4
  $region2: #{attention_dropout.1} parent=0 // loop_pre_header
    _
  $region3: #{attention_dropout.1} parent=0 // loop_header
    %s9 = sphi 0, %s13
    %p10 = scmp.ge.s32.totalorder %s9, 4
    %s16 = sphi 0, %s35
    %s17 = sphi 0, %s31
    %s18 = sphi 0, %s27
    %s19 = sphi 0, %s16
    %s20 = sphi 0, %s17
    %s21 = sphi 0, %s18
    %s22 = sphi 0, %s19
    %s23 = sphi 0, %s20
    %s24 = sphi 0, %s21
    %s40 = sphi 0, %s42
    %s43 = sphi 0, %s40
    %s44 = sphi 0, %s43
    %s60 = sphi 0, %s44
    %s68 = sphi 0, %s70
    %s71 = sphi 0, %s68
    %s72 = sphi 0, %s71
    %s88 = sphi 0, %s72
    %s96 = sphi 0, %s98
    %s99 = sphi 0, %s96
    %s100 = sphi 0, %s99
    %s116 = sphi 0, %s100
    %s124 = sphi 0, %s126
    %s127 = sphi 0, %s124
    %s128 = sphi 0, %s127
    %s144 = sphi 0, %s128
  $region4: #{attention_dropout.1} parent=0 // loop_header_branch
    %12 = sbr.rel (%p10) target = $region8
  $region5: #{attention_dropout.1} parent=0 // loop_body
    %s14 = ssub.s32 %s9, 1
    %s15 = ssub.s32 %s9, 2
    %s25 = sadd.s32 1, %s18
    %p26 = scmp.ge.s32.totalorder %s25, 1
    %s27 = scalar_select %p26, 0, %s25
    %s28 = sadd.s32 1, %s17
    %s29 = scalar_select %p26, %s28, %s17
    %p30 = scmp.ge.s32.totalorder %s29, 1
    %s31 = scalar_select %p30, 0, %s29
    %s32 = sadd.s32 1, %s16
    %s33 = scalar_select %p30, %s32, %s16
    %p34 = scmp.ge.s32.totalorder %s33, 2
    %s35 = scalar_select %p34, 0, %s33
    %s36 = ssub.s32 %s16, %s35
    %s37 = ssub.s32 %s17, %s31
    %s38 = sor.u32 %s36, %s37
    %p39 = scmp.eq.s32.totalorder %s38, 0
    %s41 = sadd.s32 %s40, 1
    %s42 = scalar_select %p39, %s40, %s41
    %p45 = pneg %p39
    %p46 = scmp.eq.s32.totalorder %s9, 1
    %p47 = por %p45, %p46
    %p48 = scmp.ne.s32.totalorder %s40, %s43
    %p49 = scmp.eq.s32.totalorder %s9, 0
    %p50 = por %p48, %p49
    %p51 = scmp.ne.s32.totalorder %s40, %s43
    %p52 = scmp.eq.s32.totalorder %s14, 1
    %p53 = por %p51, %p52
    %p54 = scmp.ne.s32.totalorder %s43, %s44
    %p55 = scmp.eq.s32.totalorder %s14, 0
    %p56 = por %p54, %p55
    %p57 = scmp.ne.s32.totalorder %s43, %s44
    %p58 = scmp.eq.s32.totalorder %s15, 1
    %p59 = por %p57, %p58
    %p61 = scmp.ne.s32.totalorder %s44, %s60
    %p62 = scmp.eq.s32.totalorder %s15, 0
    %p63 = por %p61, %p62
    %s64 = ssub.s32 %s16, %s35
    %s65 = ssub.s32 %s18, %s27
    %s66 = sor.u32 %s64, %s65
    %p67 = scmp.eq.s32.totalorder %s66, 0
    %s69 = sadd.s32 %s68, 1
    %s70 = scalar_select %p67, %s68, %s69
    %p73 = pneg %p67
    %p74 = scmp.eq.s32.totalorder %s9, 1
    %p75 = por %p73, %p74
    %p76 = scmp.ne.s32.totalorder %s68, %s71
    %p77 = scmp.eq.s32.totalorder %s9, 0
    %p78 = por %p76, %p77
    %p79 = scmp.ne.s32.totalorder %s68, %s71
    %p80 = scmp.eq.s32.totalorder %s14, 1
    %p81 = por %p79, %p80
    %p82 = scmp.ne.s32.totalorder %s71, %s72
    %p83 = scmp.eq.s32.totalorder %s14, 0
    %p84 = por %p82, %p83
    %p85 = scmp.ne.s32.totalorder %s71, %s72
    %p86 = scmp.eq.s32.totalorder %s15, 1
    %p87 = por %p85, %p86
    %p89 = scmp.ne.s32.totalorder %s72, %s88
    %p90 = scmp.eq.s32.totalorder %s15, 0
    %p91 = por %p89, %p90
    %s92 = ssub.s32 %s16, %s35
    %s93 = ssub.s32 %s18, %s27
    %s94 = sor.u32 %s92, %s93
    %p95 = scmp.eq.s32.totalorder %s94, 0
    %s97 = sadd.s32 %s96, 1
    %s98 = scalar_select %p95, %s96, %s97
    %p101 = pneg %p95
    %p102 = scmp.eq.s32.totalorder %s9, 1
    %p103 = por %p101, %p102
    %p104 = scmp.ne.s32.totalorder %s96, %s99
    %p105 = scmp.eq.s32.totalorder %s9, 0
    %p106 = por %p104, %p105
    %p107 = scmp.ne.s32.totalorder %s96, %s99
    %p108 = scmp.eq.s32.totalorder %s14, 1
    %p109 = por %p107, %p108
    %p110 = scmp.ne.s32.totalorder %s99, %s100
    %p111 = scmp.eq.s32.totalorder %s14, 0
    %p112 = por %p110, %p111
    %p113 = scmp.ne.s32.totalorder %s99, %s100
    %p114 = scmp.eq.s32.totalorder %s15, 1
    %p115 = por %p113, %p114
    %p117 = scmp.ne.s32.totalorder %s100, %s116
    %p118 = scmp.eq.s32.totalorder %s15, 0
    %p119 = por %p117, %p118
    %s120 = ssub.s32 %s16, %s35
    %s121 = ssub.s32 %s17, %s31
    %s122 = sor.u32 %s120, %s121
    %p123 = scmp.eq.s32.totalorder %s122, 0
    %s125 = sadd.s32 %s124, 1
    %s126 = scalar_select %p123, %s124, %s125
    %p129 = pneg %p123
    %p130 = scmp.eq.s32.totalorder %s9, 1
    %p131 = por %p129, %p130
    %p132 = scmp.ne.s32.totalorder %s124, %s127
    %p133 = scmp.eq.s32.totalorder %s9, 0
    %p134 = por %p132, %p133
    %p135 = scmp.ne.s32.totalorder %s124, %s127
    %p136 = scmp.eq.s32.totalorder %s14, 1
    %p137 = por %p135, %p136
    %p138 = scmp.ne.s32.totalorder %s127, %s128
    %p139 = scmp.eq.s32.totalorder %s14, 0
    %p140 = por %p138, %p139
    %p141 = scmp.ne.s32.totalorder %s127, %s128
    %p142 = scmp.eq.s32.totalorder %s15, 1
    %p143 = por %p141, %p142
    %p145 = scmp.ne.s32.totalorder %s128, %s144
    %p146 = scmp.eq.s32.totalorder %s15, 0
    %p147 = por %p145, %p146
    %p148 = scmp.le.s32.totalorder 1, %s9
    %p149 = scmp.lt.s32.totalorder %s9, 3
    %p150 = pnand %p148, %p149
    %p151 = pneg %p150
    // Predicated region
    $region9: #{attention_dropout.1} parent=5 // pred_check
      _
    $region10: #{attention_dropout.1} parent=5 // pred_check_branch
      %153 = sbr.rel (%p150) target = $region12
    $region11: #{attention_dropout.1} parent=5 // pred_region
      %s154 = ssub.s32 %s9, 1
    $region12: #{attention_dropout.1} parent=5 // pred_fallthru
      _
    %p155 = scmp.lt.s32.totalorder %s9, 2
    // Predicated region
    $region13: #{attention_dropout.1} parent=5 // pred_check
      %p156 = pneg %p155
    $region14: #{attention_dropout.1} parent=5 // pred_check_branch
      %158 = sbr.rel (%p156) target = $region16
    $region15: #{attention_dropout.1} parent=5 // pred_region
      // Predicated region
      $region17: #{attention_dropout.1} parent=15 // pred_check
        %p159 = pneg %p50
      $region18: #{attention_dropout.1} parent=15 // pred_check_branch
        %161 = sbr.rel (%p159) target = $region20
      $region19: #{attention_dropout.1} parent=15 // pred_region
        %p162 = scmp.lt.s32.totalorder %s16, 1
        %s163 = scalar_select %p162, %s16, 1
        %p164 = scmp.lt.s32.totalorder %s17, 0
        %s165 = scalar_select %p164, %s17, 0
        %s166 = sadd.s32 %s165, %s163
        %s167 = smul.addr %s166, 4
        %s168 = scalar_lea.vmem %s0, %s167
      $region20: #{attention_dropout.1} parent=15 // pred_fallthru
        _
      // Predicated region
      $region21: #{attention_dropout.1} parent=15 // pred_check
        %p169 = pneg %p78
      $region22: #{attention_dropout.1} parent=15 // pred_check_branch
        %171 = sbr.rel (%p169) target = $region24
      $region23: #{attention_dropout.1} parent=15 // pred_region
        %s172 = smul.u32 16, %s18
        %p173 = scmp.lt.s32.totalorder %s16, 1
        %s174 = scalar_select %p173, %s16, 1
        %p175 = scmp.lt.s32.totalorder %s172, 15
        %s176 = scalar_select %p175, %s172, 15
        %s177 = smul.addr %s174, 16
        %s178 = sadd.s32 %s176, %s177
        %s179 = smul.addr %s178, 4
        %s180 = scalar_lea.vmem %s1, %s179
        %s181 = smul.u32 16, %s18
      $region24: #{attention_dropout.1} parent=15 // pred_fallthru
        _
      // Predicated region
      $region25: #{attention_dropout.1} parent=15 // pred_check
        %p182 = pneg %p106
      $region26: #{attention_dropout.1} parent=15 // pred_check_branch
        %184 = sbr.rel (%p182) target = $region28
      $region27: #{attention_dropout.1} parent=15 // pred_region
        %s185 = smul.u32 16, %s18
        %p186 = scmp.lt.s32.totalorder %s16, 1
        %s187 = scalar_select %p186, %s16, 1
        %p188 = scmp.lt.s32.totalorder %s185, 15
        %s189 = scalar_select %p188, %s185, 15
        %s190 = smul.addr %s187, 16
        %s191 = sadd.s32 %s189, %s190
        %s192 = smul.addr %s191, 4
        %s193 = scalar_lea.vmem %s2, %s192
        %s194 = smul.u32 16, %s18
      $region28: #{attention_dropout.1} parent=15 // pred_fallthru
        _
    $region16: #{attention_dropout.1} parent=5 // pred_fallthru
      _
    %p195 = scmp.le.s32.totalorder 1, %s9
    %p196 = scmp.lt.s32.totalorder %s9, 3
    %p197 = pnand %p195, %p196
    %p198 = pneg %p197
    // Predicated region
    $region29: #{attention_dropout.1} parent=5 // pred_check
      _
    $region30: #{attention_dropout.1} parent=5 // pred_check_branch
      %200 = sbr.rel (%p197) target = $region32
    $region31: #{attention_dropout.1} parent=5 // pred_region
      %s201 = ssub.s32 %s9, 1
      %p202 = scmp.lt.s32.totalorder %s19, 1
      %s203 = scalar_select %p202, %s19, 1
      %p204 = scmp.lt.s32.totalorder %s20, 0
      %s205 = scalar_select %p204, %s20, 0
      %s206 = sadd.s32 %s205, %s203
      %s207 = smul.addr %s206, 4
      %s208 = scalar_lea.vmem %s0, %s207
      %p209 = pneg %p56
      %p210 = pneg %p53
      %s211 = smul.u32 16, %s21
      %p212 = scmp.lt.s32.totalorder %s19, 1
      %s213 = scalar_select %p212, %s19, 1
      %p214 = scmp.lt.s32.totalorder %s211, 15
      %s215 = scalar_select %p214, %s211, 15
      %s216 = smul.addr %s213, 16
      %s217 = sadd.s32 %s215, %s216
      %s218 = smul.addr %s217, 4
      %s219 = scalar_lea.vmem %s1, %s218
      %p220 = pneg %p84
      %p221 = pneg %p81
      %s222 = smul.u32 16, %s21
      %p223 = scmp.lt.s32.totalorder %s19, 1
      %s224 = scalar_select %p223, %s19, 1
      %p225 = scmp.lt.s32.totalorder %s222, 15
      %s226 = scalar_select %p225, %s222, 15
      %s227 = smul.addr %s224, 16
      %s228 = sadd.s32 %s226, %s227
      %s229 = smul.addr %s228, 4
      %s230 = scalar_lea.vmem %s2, %s229
      %p231 = pneg %p112
      %p232 = pneg %p109
      %p233 = pneg %p140
      %p234 = pneg %p137
      %p235 = scmp.lt.s32.totalorder %s19, 1
      %s236 = scalar_select %p235, %s19, 1
      %p237 = scmp.lt.s32.totalorder %s20, 0
      %s238 = scalar_select %p237, %s20, 0
      %s239 = sadd.s32 %s238, %s236
      %s240 = smul.addr %s239, 8
      %s241 = scalar_lea.vmem %s3, %s240
      %p242 = scmp.lt.s32.totalorder %s19, 1
      %s243 = scalar_select %p242, %s19, 1
      %p244 = scmp.lt.s32.totalorder %s20, 0
      %s245 = scalar_select %p244, %s20, 0
      %s246 = sadd.s32 %s245, %s243
      %s247 = smul.addr %s246, 4
      %s248 = scalar_lea.vmem %s0, %s247
      %s249 = smul.u32 16, %s21
      %p250 = scmp.lt.s32.totalorder %s19, 1
      %s251 = scalar_select %p250, %s19, 1
      %p252 = scmp.lt.s32.totalorder %s249, 15
      %s253 = scalar_select %p252, %s249, 15
      %s254 = smul.addr %s251, 16
      %s255 = sadd.s32 %s253, %s254
      %s256 = smul.addr %s255, 4
      %s257 = scalar_lea.vmem %s1, %s256
      %s258 = smul.u32 16, %s21
      %s259 = smul.u32 16, %s21
      %p260 = scmp.lt.s32.totalorder %s19, 1
      %s261 = scalar_select %p260, %s19, 1
      %p262 = scmp.lt.s32.totalorder %s259, 15
      %s263 = scalar_select %p262, %s259, 15
      %s264 = smul.addr %s261, 16
      %s265 = sadd.s32 %s263, %s264
      %s266 = smul.addr %s265, 4
      %s267 = scalar_lea.vmem %s2, %s266
      %s268 = smul.u32 16, %s21
      %p269 = scmp.lt.s32.totalorder %s19, 1
      %s270 = scalar_select %p269, %s19, 1
      %p271 = scmp.lt.s32.totalorder %s20, 0
      %s272 = scalar_select %p271, %s20, 0
      %s273 = sadd.s32 %s272, %s270
      %s274 = smul.addr %s273, 8
      %s275 = scalar_lea.vmem %s3, %s274
      %p276 = scmp.eq.s32.totalorder %s21, 0
      // Predicated region
      $region33: #{attention_dropout.1} parent=31 // pred_check
        %p277 = pneg %p276
      $region34: #{attention_dropout.1} parent=31 // pred_check_branch
        %279 = sbr.rel (%p277) target = $region36
      $region35: #{attention_dropout.1} parent=31 // pred_region
        %vm280 = vcmask 7168
        %281 = vst.msk [vmem:[#allocation2] sm:$0xff] %vm280, -inf
        %282 = vst.msk [vmem:[#allocation3] sm:$0xff] %vm280, 0.0
        %283 = vst [vmem:[#allocation4] sm:$0xff] 0.0
      $region36: #{attention_dropout.1} parent=31 // pred_fallthru
        _
      %v284 = vld [vmem:[%s248] sm:$0xf]
      %v285 = vld [vmem:[%s257] sm:$0xf]
      %v286 = vld [vmem:[%s257 + $0x4] sm:$0xf]
      %v287 = vld [vmem:[%s257 + $0x8] sm:$0xf]
      %v288 = vld [vmem:[%s257 + $0xc] sm:$0xf]
      %v289 = vld [vmem:[%s257 + $0x10] sm:$0xf]
      %v290 = vld [vmem:[%s257 + $0x14] sm:$0xf]
      %v291 = vld [vmem:[%s257 + $0x18] sm:$0xf]
      %v292 = vld [vmem:[%s257 + $0x1c] sm:$0xf]
      %v293 = vld [vmem:[%s257 + $0x20] sm:$0xf]
      %v294 = vld [vmem:[%s257 + $0x24] sm:$0xf]
      %v295 = vld [vmem:[%s257 + $0x28] sm:$0xf]
      %v296 = vld [vmem:[%s257 + $0x2c] sm:$0xf]
      %v297 = vld [vmem:[%s257 + $0x30] sm:$0xf]
      %v298 = vld [vmem:[%s257 + $0x34] sm:$0xf]
      %v299 = vld [vmem:[%s257 + $0x38] sm:$0xf]
      %v300 = vld [vmem:[%s257 + $0x3c] sm:$0xf]
      %v317 = vunpack.c.l.b16 %v285
      %v318 = vunpack.c.l.b16 %v286
      %v319 = vunpack.c.l.b16 %v287
      %v320 = vunpack.c.l.b16 %v288
      %v321 = vunpack.c.l.b16 %v289
      %v322 = vunpack.c.l.b16 %v290
      %v323 = vunpack.c.l.b16 %v291
      %v324 = vunpack.c.l.b16 %v292
      %v325 = vunpack.c.l.b16 %v293
      %v326 = vunpack.c.l.b16 %v294
      %v327 = vunpack.c.l.b16 %v295
      %v328 = vunpack.c.l.b16 %v296
      %v329 = vunpack.c.l.b16 %v297
      %v330 = vunpack.c.l.b16 %v298
      %v331 = vunpack.c.l.b16 %v299
      %v332 = vunpack.c.l.b16 %v300
      %v333 = vpack.c.b16 %v318, %v317
      %v334 = vpack.c.b16 %v320, %v319
      %v335 = vpack.c.b16 %v322, %v321
      %v336 = vpack.c.b16 %v324, %v323
      %v337 = vpack.c.b16 %v326, %v325
      %v338 = vpack.c.b16 %v328, %v327
      %v339 = vpack.c.b16 %v330, %v329
      %v340 = vpack.c.b16 %v332, %v331
      %349 = vmatpush.bf16.xpose.msra.mxu0 %v340
      %350 = vmatpush.bf16.xpose.msra.mxu0 %v339
      %351 = vmatpush.bf16.xpose.msra.mxu0 %v338
      %352 = vmatpush.bf16.xpose.msra.mxu0 %v337
      %353 = vmatpush.bf16.xpose.msra.mxu0 %v336
      %354 = vmatpush.bf16.xpose.msra.mxu0 %v335
      %355 = vmatpush.bf16.xpose.msra.mxu0 %v334
      %356 = vmatpush.bf16.xpose.msra.mxu0 %v333
      %357 = vmatmul.bf16.gmra.mxu0 %v284
      %v358 = vpop.f32.mrf.mxu0
      %v359 = vadd.f32 0.0, %v358
      %v360 = vpop.f32.mrf.mxu0
      %361 = vdwg.mxu0
      %s362 = smul.u32 %s21, 128
      %v363 = vlaneseq
      %v364 = vand.u32 %v363, 127
      %v365 = vstv %s362
      %v366 = vadd.s32 %v365, %v364
      %vm367 = vcmp.lt.s32.totalorder %v366, 5
      %v368 = vsel %vm367, %v359, -1e+30
      %v369 = vld [vmem:[#allocation2] sm:$0xff]
      %370 = vmax.xlane.f32.xlu0 %v368
      %v371 = vpop.xlane.xlu0 %370
      %v372 = vmax.f32 %v369, %v371
      %v373 = vsub.f32 %v369, %v372
      %v374 = vmul.f32 %v373, 1.442695
      %v375 = vpow.pop %v374
      %377 = vset.pattern.permute.xlu0 0
      %378 = vperm.xlu0 %377, %v372
      %v379 = vpop.permute.xlu0 %378
      %v381 = vsub.f32 %v368, %v379
      %v382 = vmul.f32 %v381, 1.442695
      %v383 = vpow.pop %v382
      %v384 = vld [vmem:[#allocation3] sm:$0xff]
      %v385 = vmul.f32 %v375, %v384
      %386 = vadd.xlane.f32.xlu0 %v383
      %v387 = vpop.xlane.xlu0 %386
      %v388 = vadd.f32 %v385, %v387
      %vm389 = vcmask 7168
      %390 = vst.msk [vmem:[#allocation3] sm:$0xff] %vm389, %v388
      %v391 = vld [vmem:[#allocation4] sm:$0xff]
      %393 = vset.pattern.permute.xlu0 0
      %394 = vperm.xlu0 %393, %v375
      %v395 = vpop.permute.xlu0 %394
      %v397 = vmul.f32 %v395, %v391
      %v398 = vpack.c.bf16 %v383, %v383
      %v399 = vld [vmem:[%s267] sm:$0xf]
      %v400 = vld [vmem:[%s267 + $0x4] sm:$0xf]
      %v401 = vld [vmem:[%s267 + $0x8] sm:$0xf]
      %v402 = vld [vmem:[%s267 + $0xc] sm:$0xf]
      %v403 = vld [vmem:[%s267 + $0x10] sm:$0xf]
      %v404 = vld [vmem:[%s267 + $0x14] sm:$0xf]
      %v405 = vld [vmem:[%s267 + $0x18] sm:$0xf]
      %v406 = vld [vmem:[%s267 + $0x1c] sm:$0xf]
      %v407 = vld [vmem:[%s267 + $0x20] sm:$0xf]
      %v408 = vld [vmem:[%s267 + $0x24] sm:$0xf]
      %v409 = vld [vmem:[%s267 + $0x28] sm:$0xf]
      %v410 = vld [vmem:[%s267 + $0x2c] sm:$0xf]
      %v411 = vld [vmem:[%s267 + $0x30] sm:$0xf]
      %v412 = vld [vmem:[%s267 + $0x34] sm:$0xf]
      %v413 = vld [vmem:[%s267 + $0x38] sm:$0xf]
      %v414 = vld [vmem:[%s267 + $0x3c] sm:$0xf]
      %v431 = vunpack.c.l.b16 %v399
      %v432 = vunpack.c.l.b16 %v400
      %v433 = vunpack.c.l.b16 %v401
      %v434 = vunpack.c.l.b16 %v402
      %v435 = vunpack.c.l.b16 %v403
      %v436 = vunpack.c.l.b16 %v404
      %v437 = vunpack.c.l.b16 %v405
      %v438 = vunpack.c.l.b16 %v406
      %v439 = vunpack.c.l.b16 %v407
      %v440 = vunpack.c.l.b16 %v408
      %v441 = vunpack.c.l.b16 %v409
      %v442 = vunpack.c.l.b16 %v410
      %v443 = vunpack.c.l.b16 %v411
      %v444 = vunpack.c.l.b16 %v412
      %v445 = vunpack.c.l.b16 %v413
      %v446 = vunpack.c.l.b16 %v414
      %v447 = vpack.c.b16 %v432, %v431
      %v448 = vpack.c.b16 %v434, %v433
      %v449 = vpack.c.b16 %v436, %v435
      %v450 = vpack.c.b16 %v438, %v437
      %v451 = vpack.c.b16 %v440, %v439
      %v452 = vpack.c.b16 %v442, %v441
      %v453 = vpack.c.b16 %v444, %v443
      %v454 = vpack.c.b16 %v446, %v445
      %463 = vmatpush.bf16.msra.mxu0 %v454
      %464 = vmatpush.bf16.msra.mxu0 %v453
      %465 = vmatpush.bf16.msra.mxu0 %v452
      %466 = vmatpush.bf16.msra.mxu0 %v451
      %467 = vmatpush.bf16.msra.mxu0 %v450
      %468 = vmatpush.bf16.msra.mxu0 %v449
      %469 = vmatpush.bf16.msra.mxu0 %v448
      %470 = vmatpush.bf16.msra.mxu0 %v447
      %471 = vmatmul.bf16.gmra.mxu0 %v398
      %v472 = vpop.f32.mrf.mxu0
      %v473 = vadd.f32 0.0, %v472
      %v474 = vpop.f32.mrf.mxu0
      %475 = vdwg.mxu0
      %v476 = vadd.f32 %v397, %v473
      %477 = vst [vmem:[#allocation4] sm:$0xff] %v476
      %478 = vst.msk [vmem:[#allocation2] sm:$0xff] %vm389, %v372
      // Predicated region
      $region37: #{attention_dropout.1} parent=31 // pred_check
        %p479 = pneg %p276
      $region38: #{attention_dropout.1} parent=31 // pred_check_branch
        %481 = sbr.rel (%p479) target = $region40
      $region39: #{attention_dropout.1} parent=31 // pred_region
        %v482 = vld [vmem:[#allocation3] sm:$0xff]
        %v483 = vrcp.pop %v482
        %v484 = vmul.f32 %v482, %v483
        %v485 = vsub.f32 1.0, %v484
        %v486 = vmul.f32 %v483, %v485
        %v487 = vadd.f32 %v483, %v486
        %vm488 = vweird.f32 %v482
        %vm489 = vweird.f32 %v483
        %vm490 = vmor %vm488, %vm489
        %v491 = vsel %vm490, %v483, %v487
        %v492 = vand.u32 2147483647, %v482
        %vm493 = vcmp.eq.f32.partialorder %v492, 8.507059e+37
        %v494 = vand.u32 %v482, 2147483648
        %v495 = vor.u32 1.1754944e-38, %v494
        %v496 = vsel %vm493, %v495, %v491
        %v497 = vmul.f32 1.0, %v496
        %v498 = vld [vmem:[#allocation4] sm:$0xff]
        %500 = vset.pattern.permute.xlu0 0
        %501 = vperm.xlu0 %500, %v497
        %v502 = vpop.permute.xlu0 %501
        %v504 = vmul.f32 %v498, %v502
        %505 = vst [vmem:[%s275] sm:$0xff] %v504
      $region40: #{attention_dropout.1} parent=31 // pred_fallthru
        _
      %p506 = scmp.lt.s32.totalorder %s19, 1
      %s507 = scalar_select %p506, %s19, 1
      %p508 = scmp.lt.s32.totalorder %s20, 0
      %s509 = scalar_select %p508, %s20, 0
      %s510 = sadd.s32 %s509, %s507
      %s511 = smul.addr %s510, 8
      %s512 = scalar_lea.vmem %s3, %s511
      // Predicated region
      $region41: #{attention_dropout.1} parent=31 // pred_check
        %p513 = pneg %p137
      $region42: #{attention_dropout.1} parent=31 // pred_check_branch
        %515 = sbr.rel (%p513) target = $region44
      $region43: #{attention_dropout.1} parent=31 // pred_region
        _
      $region44: #{attention_dropout.1} parent=31 // pred_fallthru
        _
    $region32: #{attention_dropout.1} parent=5 // pred_fallthru
      _
    %p516 = scmp.le.s32.totalorder 2, %s9
    // Predicated region
    $region45: #{attention_dropout.1} parent=5 // pred_check
      %p517 = pneg %p516
    $region46: #{attention_dropout.1} parent=5 // pred_check_branch
      %519 = sbr.rel (%p517) target = $region48
    $region47: #{attention_dropout.1} parent=5 // pred_region
      %s520 = ssub.s32 %s9, 2
      // Predicated region
      $region49: #{attention_dropout.1} parent=47 // pred_check
        %p521 = pneg %p143
      $region50: #{attention_dropout.1} parent=47 // pred_check_branch
        %523 = sbr.rel (%p521) target = $region52
      $region51: #{attention_dropout.1} parent=47 // pred_region
        %p524 = scmp.lt.s32.totalorder %s22, 1
        %s525 = scalar_select %p524, %s22, 1
        %p526 = scmp.lt.s32.totalorder %s23, 0
        %s527 = scalar_select %p526, %s23, 0
        %s528 = sadd.s32 %s527, %s525
        %s529 = smul.addr %s528, 8
        %s530 = scalar_lea.vmem %s3, %s529
      $region52: #{attention_dropout.1} parent=47 // pred_fallthru
        _
    $region48: #{attention_dropout.1} parent=5 // pred_fallthru
      _
  $region6: #{attention_dropout.1} parent=0 // loop_footer
    %s13 = sadd.s32 1, %s9
  $region7: #{attention_dropout.1} parent=0 // loop_footer_branch
    %8 = sbr.rel target = $region3
  $region8: #{attention_dropout.1} parent=0 // loop_exit
    _

</llo_original>
